<compile_context>
chip_gen: v6e
topology: v6e:2x2x1
jax: 0.10.0
libtpu: 0.0.40
codegen_flags: <defaults>
</compile_context>

<pallas_src>
import functools

import jax
import jax.numpy as jnp
from jax.experimental import pallas as pl
from jax.experimental.pallas import tpu as pltpu


def _soft_targets_loss_kernel(logits_ref, target_ref, out_ref, *,
                              tile_n, n_rows, ragged):
    """One grid step: reduce a (tile_n, C) row tile to a scalar partial.

    logits_ref / target_ref : (tile_n, C) in VMEM (native dtype)
    out_ref                 : (1, 1) f32, resident across the whole grid
    """
    @pl.when(pl.program_id(0) == 0)
    def _init():
        out_ref[...] = jnp.zeros_like(out_ref)

    x = logits_ref[...].astype(jnp.float32)          # (tile_n, C)
    t = target_ref[...].astype(jnp.float32)          # (tile_n, C)

    # Numerically stable log-sum-exp along the lane (class) axis.
    m = jnp.max(x, axis=-1, keepdims=True)           # (tile_n, 1)
    lse = jnp.log(jnp.sum(jnp.exp(x - m), axis=-1, keepdims=True))

    # sum(logp * t) = sum(x * t) - (m + lse) * sum(t)
    #   (no logp slab; `x - m` is single-use, consumed only by exp)
    xt = jnp.sum(x * t, axis=-1, keepdims=True)      # (tile_n, 1)
    tsum = jnp.sum(t, axis=-1, keepdims=True)        # (tile_n, 1)
    per_row = xt - (m + lse) * tsum                  # (tile_n, 1)

    if ragged:
        # Zero out contributions from rows past the true N (last tile only;
        # those rows of the input block contain undefined data).
        row = (pl.program_id(0) * tile_n
               + jax.lax.broadcasted_iota(jnp.int32, (tile_n, 1), 0))
        per_row = jnp.where(row < n_rows, per_row, 0.0)

    out_ref[...] += jnp.sum(per_row, keepdims=True)  # (1, 1)


def _pick_tile_n(n, c, logits_itemsize, target_itemsize):
    """Largest row tile whose pipelined footprint fits the VMEM budget.

    Accounts for 2 pipeline buffers of each input (their own itemsizes) plus
    ~3 full-tile f32 intermediates materialized by the kernel body.
    """
    sub = 16                                          # covers f32 (8) and bf16 (16) packing
    budget = 40 * 1024 * 1024                         # vs 48 MiB scoped limit
    per_row = 2 * c * (logits_itemsize + target_itemsize) + 3 * c * 4
    max_rows = max(sub, budget // per_row)
    tile = min(2048, max_rows)
    tile = max(sub, (tile // sub) * sub)
    n_rounded = ((n + sub - 1) // sub) * sub
    return min(tile, n_rounded)


@functools.partial(jax.jit, static_argnames=("reduction",))
def soft_targets_loss(logits, target, reduction="mean"):
    """Pallas implementation of soft_targets_loss for 2-D (N, C) inputs."""
    if reduction not in ("mean", "sum"):
        raise ValueError('Reduction "{}" is not supported.'.format(reduction))
    N, C = logits.shape
    assert target.shape == (N, C)

    l_item = jnp.dtype(logits.dtype).itemsize
    t_item = jnp.dtype(target.dtype).itemsize
    tile_n = _pick_tile_n(N, C, l_item, t_item)
    grid = (pl.cdiv(N, tile_n),)
    ragged = (N % tile_n) != 0

    kernel = functools.partial(
        _soft_targets_loss_kernel, tile_n=tile_n, n_rows=N, ragged=ragged)

    cost = pl.CostEstimate(
        flops=5 * N * C,                              # max/sub/mul/add per element
        transcendentals=N * C + N,                    # exp per element, log per row
        bytes_accessed=N * C * (l_item + t_item) + 4, # read both inputs, write scalar
    )

    total = pl.pallas_call(
        kernel,
        out_shape=jax.ShapeDtypeStruct((1, 1), jnp.float32),
        grid_spec=pltpu.PrefetchScalarGridSpec(
            num_scalar_prefetch=0,
            grid=grid,
            in_specs=[
                pl.BlockSpec((tile_n, C), lambda i: (i, 0)),
                pl.BlockSpec((tile_n, C), lambda i: (i, 0)),
            ],
            # Single (1,1) accumulator block resident across the whole grid.
            out_specs=pl.BlockSpec((1, 1), lambda i: (0, 0)),
        ),
        compiler_params=pltpu.CompilerParams(
            dimension_semantics=("arbitrary",),        # loop-carried accumulator
            vmem_limit_bytes=48 * 1024 * 1024,         # < v7x physical 64 MiB/TC
        ),
        cost_estimate=cost,
    )(logits, target)

    total = total[0, 0]
    if reduction == "mean":
        return -total / jnp.float32(N)
    return -total


if __name__ == "__main__":
    key = jax.random.PRNGKey(0)
    k1, k2, k3, k4 = jax.random.split(key, 4)

    # Small (batch, classes) problem consistent with the module's forward.
    N, C = 16, 128
    logits = jax.random.normal(k1, (N, C), dtype=jnp.float32)
    target = jax.nn.softmax(jax.random.normal(k2, (N, C), dtype=jnp.float32), axis=-1)

    loss = jax.block_until_ready(soft_targets_loss(logits, target, reduction="mean"))
    ref = -jnp.mean(jnp.sum(jax.nn.log_softmax(logits, axis=-1) * target, axis=1))
    assert jnp.allclose(loss, ref, rtol=1e-5, atol=1e-5), (loss, ref)

    # 'sum' reduction path.
    loss_sum = jax.block_until_ready(soft_targets_loss(logits, target, reduction="sum"))
    ref_sum = -jnp.sum(jnp.sum(jax.nn.log_softmax(logits, axis=-1) * target, axis=1))
    assert jnp.allclose(loss_sum, ref_sum, rtol=1e-5, atol=1e-5), (loss_sum, ref_sum)

    # Ragged batch (N not a multiple of the sublane tile) exercises the
    # in-kernel row-masking path (no wrapper-side padding anymore).
    N2 = 13
    logits2 = jax.random.normal(k3, (N2, C), dtype=jnp.float32)
    target2 = jax.nn.softmax(jax.random.normal(k4, (N2, C), dtype=jnp.float32), axis=-1)
    loss2 = jax.block_until_ready(soft_targets_loss(logits2, target2, reduction="mean"))
    ref2 = -jnp.mean(jnp.sum(jax.nn.log_softmax(logits2, axis=-1) * target2, axis=1))
    assert jnp.allclose(loss2, ref2, rtol=1e-5, atol=1e-5), (loss2, ref2)

    print("KERNEL_OK")
</pallas_src>

<mosaic_0001>
module attributes {stable_mosaic.version = 11 : i64} {
  func.func @_soft_targets_loss_kernel(%arg0: i32, %arg1: memref<16x128xf32, #tpu.memory_space<vmem>>, %arg2: memref<16x128xf32, #tpu.memory_space<vmem>>, %arg3: memref<1x1xf32, #tpu.memory_space<vmem>>) attributes {dimension_semantics = [#tpu.dimension_semantics<arbitrary>], iteration_bounds = array<i64: 1>, scalar_prefetch = 0 : i64, scratch_operands = 0 : i64, tpu.core_type = #tpu.core_type<tc>, window_params = [{transform_indices = @transform_0, window_bounds = array<i64: 16, 128>}, {transform_indices = @transform_1, window_bounds = array<i64: 16, 128>}, {pipeline_mode = #tpu.pipeline_mode<synchronous>, transform_indices = @transform_2, window_bounds = array<i64: 1, 1>}]} {
    %c0_i32 = arith.constant 0 : i32
    %0 = arith.cmpi eq, %arg0, %c0_i32 : i32
    %1 = arith.extui %0 : i1 to i32
    %c0_i32_0 = arith.constant 0 : i32
    %2 = arith.cmpi ne, %1, %c0_i32_0 : i32
    scf.if %2 {
      %cst_12 = arith.constant 0.000000e+00 : f32
      %29 = vector.broadcast %cst_12 : f32 to vector<1x1xf32>
      %c0_13 = arith.constant 0 : index
      %c0_14 = arith.constant 0 : index
      %30 = vector.load %arg3[%c0_13, %c0_14] : memref<1x1xf32, #tpu.memory_space<vmem>>, vector<1x1xf32>
      tpu.vector_store %arg3[%c0_13, %c0_14], %29 {strides = array<i32>} : memref<1x1xf32, #tpu.memory_space<vmem>>, vector<1x1xf32>,
    } else {
    }
    %c0 = arith.constant 0 : index
    %c0_1 = arith.constant 0 : index
    %3 = vector.load %arg1[%c0, %c0_1] : memref<16x128xf32, #tpu.memory_space<vmem>>, vector<16x128xf32>
    %c0_2 = arith.constant 0 : index
    %c0_3 = arith.constant 0 : index
    %4 = vector.load %arg2[%c0_2, %c0_3] : memref<16x128xf32, #tpu.memory_space<vmem>>, vector<16x128xf32>
    %cst = arith.constant dense<0xFF800000> : vector<16xf32>
    %5 = vector.multi_reduction <maximumf>, %3, %cst [1] : vector<16x128xf32> to vector<16xf32>
    %6 = vector.shape_cast %5 : vector<16xf32> to vector<16x1xf32>
    %7 = vector.broadcast %6 : vector<16x1xf32> to vector<16x128xf32>
    %8 = arith.subf %3, %7 : vector<16x128xf32>
    %9 = math.exp %8 : vector<16x128xf32>
    %cst_4 = arith.constant dense<0.000000e+00> : vector<16xf32>
    %10 = vector.multi_reduction <add>, %9, %cst_4 [1] : vector<16x128xf32> to vector<16xf32>
    %11 = vector.shape_cast %10 : vector<16xf32> to vector<16x1xf32>
    %12 = math.log %11 : vector<16x1xf32>
    %13 = arith.mulf %3, %4 : vector<16x128xf32>
    %cst_5 = arith.constant dense<0.000000e+00> : vector<16xf32>
    %14 = vector.multi_reduction <add>, %13, %cst_5 [1] : vector<16x128xf32> to vector<16xf32>
    %15 = vector.shape_cast %14 : vector<16xf32> to vector<16x1xf32>
    %cst_6 = arith.constant dense<0.000000e+00> : vector<16xf32>
    %16 = vector.multi_reduction <add>, %4, %cst_6 [1] : vector<16x128xf32> to vector<16xf32>
    %17 = vector.shape_cast %16 : vector<16xf32> to vector<16x1xf32>
    %18 = arith.addf %6, %12 : vector<16x1xf32>
    %19 = arith.mulf %18, %17 : vector<16x1xf32>
    %20 = arith.subf %15, %19 : vector<16x1xf32>
    %c0_7 = arith.constant 0 : index
    %c0_8 = arith.constant 0 : index
    %21 = vector.load %arg3[%c0_7, %c0_8] : memref<1x1xf32, #tpu.memory_space<vmem>>, vector<1x1xf32>
    %22 = vector.shape_cast %20 : vector<16x1xf32> to vector<1x16x1xf32>
    %cst_9 = arith.constant dense<0.000000e+00> : vector<1xf32>
    %23 = vector.multi_reduction <add>, %22, %cst_9 [1, 2] : vector<1x16x1xf32> to vector<1xf32>
    %24 = vector.shape_cast %23 : vector<1xf32> to vector<1x1x1xf32>
    %25 = vector.extract %24[0, 0, 0] : f32 from vector<1x1x1xf32>
    %26 = vector.broadcast %25 : f32 to vector<1x1xf32>
    %27 = arith.addf %21, %26 : vector<1x1xf32>
    %c0_10 = arith.constant 0 : index
    %c0_11 = arith.constant 0 : index
    %28 = vector.load %arg3[%c0_10, %c0_11] : memref<1x1xf32, #tpu.memory_space<vmem>>, vector<1x1xf32>
    tpu.vector_store %arg3[%c0_10, %c0_11], %27 {strides = array<i32>} : memref<1x1xf32, #tpu.memory_space<vmem>>, vector<1x1xf32>,
    return
  }
  func.func @transform_0(%arg0: i32) -> (i32, i32) {
    %c0_i32 = arith.constant 0 : i32
    %c0_i32_0 = arith.constant 0 : i32
    return %arg0, %c0_i32 : i32, i32
  }
  func.func @transform_1(%arg0: i32) -> (i32, i32) {
    %c0_i32 = arith.constant 0 : i32
    %c0_i32_0 = arith.constant 0 : i32
    return %arg0, %c0_i32 : i32, i32
  }
  func.func @transform_2(%arg0: i32) -> (i32, i32) {
    %c0_i32 = arith.constant 0 : i32
    %c0_i32_0 = arith.constant 0 : i32
    %c0_i32_1 = arith.constant 0 : i32
    return %c0_i32, %c0_i32_0 : i32, i32
  }
}

</mosaic_0001>

<llo_original>
// kernel: soft_targets_loss.1
$region0: #{soft_targets_loss.1}
  #allocation0 [shape = 'u32[]', space=smem, size = 0x4, offset = 0x4, fixed_abs, tag = 'smem constant byte address 0x4 - core index']
  #allocation1 [shape = 'u32[144,128]{1,0:T(1,128)}', space=vmem, size = 0x12000, scoped, tag = 'internal scratch']
  %s0 = inlined_call_operand.hbm [shape: f32[16,128], index: 0, kind: input, shape index: {}]
  %s1 = inlined_call_operand.hbm [shape: f32[16,128], index: 1, kind: input, shape index: {}]
  %s2 = inlined_call_operand.hbm [shape: f32[1,1], index: 2, kind: output, shape index: {}]
  %s3 = sld [smem:[#allocation0]]
  $region30: #{soft_targets_loss.1} parent=0
    _
  %s5 = ssub.s32 1, %s3
  %s6 = scalar_select 0, %s5, %s3
  $region1: #{soft_targets_loss.1} parent=0
    #allocation2 [shape = 'u8[8192]{0}', space=vmem, size = 0x2000, scoped, tag = 'input window, operand 0, single buffered']
    #allocation3 [shape = 's32[1]{0}', space=sflag, size = 0x4, scoped, tag = 'scoped memory for soft_targets_loss.1']
    #allocation4 [shape = 's32[1]{0}', space=sflag, size = 0x4, scoped, tag = 'scoped memory for soft_targets_loss.1']
    #allocation5 [shape = 'u8[8192]{0}', space=vmem, size = 0x2000, scoped, tag = 'input window, operand 1, single buffered']
    #allocation6 [shape = 's32[1]{0}', space=sflag, size = 0x4, scoped, tag = 'scoped memory for soft_targets_loss.1']
    #allocation7 [shape = 'u8[512]{0}', space=vmem, size = 0x400, scoped, tag = 'output window, operand 0, single buffered']
    %7 = vsyncpa [#allocation3], 0
    %8 = vsyncpa [#allocation6], 0
    %9 = vsyncpa [#allocation4], 0
    // Predicated region
    $region2: #{soft_targets_loss.1} parent=1 // pred_check
      _
    $region3: #{soft_targets_loss.1} parent=1 // pred_check_branch
      %11 = sbr.rel (0) target = $region5
    $region4: #{soft_targets_loss.1} parent=1 // pred_region
      %s13 = ssub.s32 256, 256
      %14 = vsyncadd [#allocation3], %s13
      %s15 = sshll.u32 [#allocation2], 4
      %s16 = int_to_ptr.vmem [resolvable:$true] %s15
      %21 = dma.hbm_to_vmem [thread:$0]  %s0, 256, %s16, [#allocation3], 128, 128, 8
    $region5: #{soft_targets_loss.1} parent=1 // pred_fallthru
      _
    // Predicated region
    $region6: #{soft_targets_loss.1} parent=1 // pred_check
      _
    $region7: #{soft_targets_loss.1} parent=1 // pred_check_branch
      %23 = sbr.rel (0) target = $region9
    $region8: #{soft_targets_loss.1} parent=1 // pred_region
      %s25 = ssub.s32 256, 256
      %26 = vsyncadd [#allocation6], %s25
      %s27 = sshll.u32 [#allocation5], 4
      %s28 = int_to_ptr.vmem [resolvable:$true] %s27
      %33 = dma.hbm_to_vmem [thread:$0]  %s1, 256, %s28, [#allocation6], 128, 128, 8
    $region9: #{soft_targets_loss.1} parent=1 // pred_fallthru
      _
    // Predicated region
    $region10: #{soft_targets_loss.1} parent=1 // pred_check
      _
    $region11: #{soft_targets_loss.1} parent=1 // pred_check_branch
      %35 = sbr.rel (0) target = $region13
    $region12: #{soft_targets_loss.1} parent=1 // pred_region
      %36 = dma.done [#allocation3], 256
    $region13: #{soft_targets_loss.1} parent=1 // pred_fallthru
      _
    // Predicated region
    $region14: #{soft_targets_loss.1} parent=1 // pred_check
      _
    $region15: #{soft_targets_loss.1} parent=1 // pred_check_branch
      %38 = sbr.rel (0) target = $region17
    $region16: #{soft_targets_loss.1} parent=1 // pred_region
      %39 = dma.done [#allocation6], 256
    $region17: #{soft_targets_loss.1} parent=1 // pred_fallthru
      _
    %p40 = scmp.eq.s32.totalorder 0, 0
    // Predicated region
    $region18: #{soft_targets_loss.1} parent=1 // pred_check
      %p41 = pneg %p40
    $region19: #{soft_targets_loss.1} parent=1 // pred_check_branch
      %43 = sbr.rel (%p41) target = $region21
    $region20: #{soft_targets_loss.1} parent=1 // pred_region
      %vm44 = vcmask 0
      %45 = vst.msk [vmem:[#allocation7] sm:$0x1] %vm44, 0.0
    $region21: #{soft_targets_loss.1} parent=1 // pred_fallthru
      _
    %v46 = vld [vmem:[#allocation2] sm:$0xff]
    %v47 = vld [vmem:[#allocation2 + $0x8] sm:$0xff]
    %v48 = vld [vmem:[#allocation5] sm:$0xff]
    %v49 = vld [vmem:[#allocation5 + $0x8] sm:$0xff]
    %50 = vmax.xlane.f32.xlu0 %v46
    %v51 = vpop.xlane.xlu0 %50
    %52 = vmax.xlane.f32.xlu0 %v47
    %v53 = vpop.xlane.xlu0 %52
    %v54 = vsub.f32 %v46, %v51
    %v55 = vsub.f32 %v47, %v53
    %v56 = vmul.f32 %v54, 1.442695
    %v57 = vpow.pop %v56
    %v58 = vmul.f32 %v55, 1.442695
    %v59 = vpow.pop %v58
    %60 = vadd.xlane.f32.xlu0 %v57
    %v61 = vpop.xlane.xlu0 %60
    %62 = vadd.xlane.f32.xlu0 %v59
    %v63 = vpop.xlane.xlu0 %62
    %v64 = vlog2.pop %v61
    %v65 = vmul.f32 %v64, 0.6931472
    %v66 = vlog2.pop %v63
    %v67 = vmul.f32 %v66, 0.6931472
    %v68 = vmul.f32 %v46, %v48
    %v69 = vmul.f32 %v47, %v49
    %70 = vadd.xlane.f32.xlu0 %v68
    %v71 = vpop.xlane.xlu0 %70
    %72 = vadd.xlane.f32.xlu0 %v69
    %v73 = vpop.xlane.xlu0 %72
    %74 = vadd.xlane.f32.xlu0 %v48
    %v75 = vpop.xlane.xlu0 %74
    %76 = vadd.xlane.f32.xlu0 %v49
    %v77 = vpop.xlane.xlu0 %76
    %v78 = vadd.f32 %v51, %v65
    %v79 = vadd.f32 %v53, %v67
    %v80 = vmul.f32 %v78, %v75
    %v81 = vmul.f32 %v79, %v77
    %v82 = vsub.f32 %v71, %v80
    %v83 = vsub.f32 %v73, %v81
    %v84 = vld [vmem:[#allocation7] sm:$0x1]
    %vm85 = vcmask 7168
    %v86 = vsel %vm85, %v82, 0.0
    %v87 = vsel %vm85, %v83, 0.0
    %v88 = vadd.f32 %v86, %v87
    %89 = vadd.xlane.f32.xlu0 %v88
    %v90 = vpop.xlane.xlu0 %89
    %v91 = vrot.slane %v90, 4
    %v92 = vadd.f32 %v90, %v91
    %v93 = vrot.slane %v92, 2
    %v94 = vadd.f32 %v92, %v93
    %v95 = vrot.slane %v94, 1
    %v96 = vadd.f32 %v94, %v95
    %s97 = vtos %v96
    %v98 = vstv %s97
    %v99 = vadd.f32 %v84, %v98
    %vm100 = vcmask 0
    %101 = vst.msk [vmem:[#allocation7] sm:$0x1] %vm100, %v99
    // Predicated region
    $region22: #{soft_targets_loss.1} parent=1 // pred_check
      _
    $region23: #{soft_targets_loss.1} parent=1 // pred_check_branch
      %103 = sbr.rel (0) target = $region25
    $region24: #{soft_targets_loss.1} parent=1 // pred_region
      %s105 = ssub.s32 16, 16
      %106 = vsyncadd [#allocation4], %s105
      %s108 = sshll.u32 [#allocation7], 4
      %s109 = int_to_ptr.vmem [resolvable:$true] %s108
      %111 = dma.vmem_to_hbm [thread:$0]  %s109, 16, %s2, [#allocation4]
    $region25: #{soft_targets_loss.1} parent=1 // pred_fallthru
      _
    // Predicated region
    $region26: #{soft_targets_loss.1} parent=1 // pred_check
      _
    $region27: #{soft_targets_loss.1} parent=1 // pred_check_branch
      %113 = sbr.rel (0) target = $region29
    $region28: #{soft_targets_loss.1} parent=1 // pred_region
      %114 = dma.done [#allocation4], 16
    $region29: #{soft_targets_loss.1} parent=1 // pred_fallthru
      _
    %115 = vsyncpa [#allocation3], 1
    %116 = vsyncpa [#allocation6], 1
    %117 = vsyncpa [#allocation4], 1

</llo_original>
